<compile_context>
chip_gen: v6e
topology: v6e:2x2x1
jax: 0.10.0
libtpu: 0.0.40
codegen_flags: <defaults>
</compile_context>

<pallas_src>
import jax
import jax.numpy as jnp
from jax.experimental import pallas as pl
from jax.experimental.pallas import tpu as pltpu

HIDDEN_DIM = 256            # matches `hidden_dim = 256` in the PyTorch module
LN_EPS = 1e-5               # torch.nn.LayerNorm default eps
_MB = 1024 * 1024


def _decoder_kernel(ids_ref, m2_ref, gb_ref, eout_ref, o_ref):
    ids = ids_ref[...]                                    # (tm, 1) int32
    tm = ids.shape[0]
    vr = m2_ref.shape[0]                                  # vocab rows of fused table

    # Exact row-select of the fused (vocab, V) table on the MXU: one-hot @ table.
    # Products are x*1 / x*0, so the selected row is exact in f32.
    iota = jax.lax.broadcasted_iota(jnp.int32, (tm, vr), 1)
    onehot = (iota == ids).astype(jnp.float32)            # (tm, Vr) exact 0/1
    logits = jnp.dot(onehot, m2_ref[...],
                     preferred_element_type=jnp.float32)  # == U_d[y] @ W + b  (f32)

    x = eout_ref[...] + logits                            # residual add (f32)

    # LayerNorm over last dim -- two-pass variance (numerically safe).
    mean = jnp.mean(x, axis=-1, keepdims=True)
    xc = x - mean
    var = jnp.mean(xc * xc, axis=-1, keepdims=True)
    xn = xc * jax.lax.rsqrt(var + LN_EPS)

    gb = gb_ref[...]                                      # (8, V): row0=gamma, row1=beta
    xn = xn * gb[0:1, :] + gb[1:2, :]

    # Softmax over last dim -- exact normalization.
    m = jnp.max(xn, axis=-1, keepdims=True)
    e = jnp.exp(xn - m)
    denom = jnp.sum(e, axis=-1, keepdims=True)
    o_ref[...] = (e / denom).astype(o_ref.dtype)


def _pick_tm(M, V, tm_cap):
    """Largest multiple-of-8 row tile <= tm_cap that does not exceed the (rounded)
    row count and keeps the double-buffered f32 e_out + out blocks under ~16 MiB."""
    mem_cap = max(8, (16 * _MB) // (4 * V * 4))           # 2 bufs x (e_out + out)
    tm = min(tm_cap, mem_cap, M + (-M) % 8)               # round M up to mult of 8
    return max(8, (tm // 8) * 8)


def decoder_forward(e_out, y, U_d, W, b, gamma, beta, *, tm_cap=1024):
    """e_out: (B, S, V) f32;  y: (B, S) int;  returns (B, S, V) f32 softmax probs.

    U_d: (word_dim2, H) embedding table; W: (H, word_dim2) linear weight (in, out);
    b, gamma, beta: (1, word_dim2) (or flat (word_dim2,)).
    """
    B, S, V = e_out.shape
    Vr, H = U_d.shape
    M = B * S

    if Vr * V * 4 > 8 * _MB:
        # TODO(synk): large-vocab path -- scalar-prefetch ids and DMA-gather U_d rows
        # with a data-dependent index_map instead of a VMEM-resident fused table.
        raise NotImplementedError(
            "decoder_forward: fused (word_dim2 x word_dim2) table too large for VMEM")

    # Fuse embedding + linear + bias once per call (independent of batch*seq):
    #   M2b[v, :] = U_d[v, :] @ W + b   ->  per-token logits become a row lookup.
    m2b = jnp.dot(U_d.astype(jnp.float32), W.astype(jnp.float32),
                  preferred_element_type=jnp.float32)
    m2b = m2b + b.reshape(1, V).astype(jnp.float32)

    # Pack gamma / beta into a single aligned (8, V) operand (rows 0 / 1).
    gb = jnp.zeros((8, V), jnp.float32)
    gb = gb.at[0].set(gamma.reshape(V).astype(jnp.float32))
    gb = gb.at[1].set(beta.reshape(V).astype(jnp.float32))

    eout2d = e_out.reshape(M, V).astype(jnp.float32)      # no pad, no copy-back slice
    tm = _pick_tm(M, V, tm_cap)
    grid = (pl.cdiv(M, tm),)

    # Only the tiny id vector is padded to a whole number of tiles (pad id 0 is valid).
    Mp = grid[0] * tm
    ids = y.reshape(M).astype(jnp.int32)
    if Mp != M:
        ids = jnp.pad(ids, (0, Mp - M))
    ids2d = ids.reshape(Mp, 1)

    # VMEM estimate: stream blocks (double-buffered) + resident constants + temporaries.
    est = (4 * tm * V * 4                 # e_out + out blocks, 2 buffers each
           + 2 * Vr * V * 4               # fused table
           + 2 * 8 * V * 4                # gamma/beta pack
           + 2 * tm * 128 * 4             # (tm, 1) id blocks are lane-padded in VMEM
           + tm * Vr * 4 + 4 * tm * V * 4)  # in-kernel temporaries (one-hot, x, e, ...)
    compiler_kwargs = dict(dimension_semantics=("parallel",))
    if est > 12 * _MB:
        # Never set a limit below the default scoped limit of any generation.
        compiler_kwargs["vmem_limit_bytes"] = int(min(max(2 * est, 32 * _MB), 56 * _MB))

    out = pl.pallas_call(
        _decoder_kernel,
        out_shape=jax.ShapeDtypeStruct((M, V), jnp.float32),
        grid=grid,
        in_specs=[
            pl.BlockSpec((tm, 1), lambda i: (i, 0)),      # token ids
            pl.BlockSpec((Vr, V), lambda i: (0, 0)),      # fused table (fetched once)
            pl.BlockSpec((8, V), lambda i: (0, 0)),       # gamma/beta (fetched once)
            pl.BlockSpec((tm, V), lambda i: (i, 0)),      # e_out rows (ragged tail masked)
        ],
        out_specs=pl.BlockSpec((tm, V), lambda i: (i, 0)),
        compiler_params=pltpu.CompilerParams(**compiler_kwargs),
    )(ids2d, m2b, gb, eout2d)

    return out.reshape(B, S, V)


def reference_forward(e_out, y, U_d, W, b, gamma, beta):
    """Pure-JAX f32 reference matching the PyTorch forward."""
    emb = U_d[y]                                          # (B, S, H)
    logits = jnp.einsum("bsh,hv->bsv", emb, W) + b.reshape(-1)
    x = e_out + logits
    mean = jnp.mean(x, -1, keepdims=True)
    var = jnp.mean((x - mean) ** 2, -1, keepdims=True)
    xn = (x - mean) / jnp.sqrt(var + LN_EPS)
    xn = xn * gamma.reshape(-1) + beta.reshape(-1)
    return jax.nn.softmax(xn, axis=-1)


if __name__ == "__main__":
    # Small, deterministic example shapes.
    B, S = 2, 8
    WORD_DIM2 = 128          # vocab size
    H = HIDDEN_DIM

    key = jax.random.PRNGKey(0)
    k1, k2, k3, k4, k5 = jax.random.split(key, 5)

    # Parameters (shapes follow the nn.Module __init__; Linear weight stored (in, out)).
    U_d = jax.random.normal(k1, (WORD_DIM2, H), dtype=jnp.float32) * 0.02
    W = jax.random.normal(k2, (H, WORD_DIM2), dtype=jnp.float32) * 0.02
    b = jax.random.normal(k3, (1, WORD_DIM2), dtype=jnp.float32) * 0.02
    gamma = jnp.ones((1, WORD_DIM2), dtype=jnp.float32)   # LayerNorm weight
    beta = jnp.zeros((1, WORD_DIM2), dtype=jnp.float32)   # LayerNorm bias

    # Inputs.
    e_out = jax.random.normal(k4, (B, S, WORD_DIM2), dtype=jnp.float32)
    y = jax.random.randint(k5, (B, S), 0, WORD_DIM2, dtype=jnp.int32)

    out = decoder_forward(e_out, y, U_d, W, b, gamma, beta)
    out = jax.block_until_ready(out)

    ref = reference_forward(e_out, y, U_d, W, b, gamma, beta)
    assert out.shape == (B, S, WORD_DIM2)
    # Everything is f32 with an exact row-select and exact softmax divide.
    assert jnp.allclose(out, ref, atol=1e-4, rtol=1e-3), "mismatch vs reference"
    assert jnp.allclose(jnp.sum(out, -1), jnp.ones((B, S)), atol=1e-4)

    print("KERNEL_OK")
</pallas_src>

<mosaic_0001>
module attributes {stable_mosaic.version = 11 : i64} {
  func.func @_decoder_kernel(%arg0: i32, %arg1: memref<16x1xi32, #tpu.memory_space<vmem>>, %arg2: memref<128x128xf32, #tpu.memory_space<vmem>>, %arg3: memref<8x128xf32, #tpu.memory_space<vmem>>, %arg4: memref<16x128xf32, #tpu.memory_space<vmem>>, %arg5: memref<16x128xf32, #tpu.memory_space<vmem>>) attributes {dimension_semantics = [#tpu.dimension_semantics<parallel>], iteration_bounds = array<i64: 1>, scalar_prefetch = 0 : i64, scratch_operands = 0 : i64, tpu.core_type = #tpu.core_type<tc>, window_params = [{transform_indices = @transform_0, window_bounds = array<i64: 16, 1>}, {pipeline_mode = #tpu.pipeline_mode<synchronous>, transform_indices = @transform_1, window_bounds = array<i64: 128, 128>}, {pipeline_mode = #tpu.pipeline_mode<synchronous>, transform_indices = @transform_2, window_bounds = array<i64: 8, 128>}, {transform_indices = @transform_3, window_bounds = array<i64: 16, 128>}, {transform_indices = @transform_4, window_bounds = array<i64: 16, 128>}]} {
    %c0 = arith.constant 0 : index
    %c0_0 = arith.constant 0 : index
    %0 = vector.load %arg1[%c0, %c0_0] : memref<16x1xi32, #tpu.memory_space<vmem>>, vector<16x1xi32>
    %1 = tpu.iota {dimensions = array<i32: 1>} : vector<16x128xi32>
    %2 = vector.broadcast %0 : vector<16x1xi32> to vector<16x128xi32>
    %3 = arith.cmpi eq, %1, %2 : vector<16x128xi32>
    %4 = arith.extui %3 : vector<16x128xi1> to vector<16x128xi32>
    %5 = arith.sitofp %4 : vector<16x128xi32> to vector<16x128xf32>
    %c0_1 = arith.constant 0 : index
    %c0_2 = arith.constant 0 : index
    %6 = vector.load %arg2[%c0_1, %c0_2] : memref<128x128xf32, #tpu.memory_space<vmem>>, vector<128x128xf32>
    %cst = arith.constant dense<0.000000e+00> : vector<16x128xf32>
    %7 = tpu.matmul %5, %6, %cst {dimension_numbers = #tpu.dot_dimension_numbers<[1], [0], [0], [1], [0, 0, 1, 1], [], []>} : vector<16x128xf32>, vector<128x128xf32>, vector<16x128xf32> -> vector<16x128xf32>
    %c0_3 = arith.constant 0 : index
    %c0_4 = arith.constant 0 : index
    %8 = vector.load %arg4[%c0_3, %c0_4] : memref<16x128xf32, #tpu.memory_space<vmem>>, vector<16x128xf32>
    %9 = arith.addf %8, %7 : vector<16x128xf32>
    %cst_5 = arith.constant dense<0.000000e+00> : vector<16xf32>
    %10 = vector.multi_reduction <add>, %9, %cst_5 [1] : vector<16x128xf32> to vector<16xf32>
    %11 = vector.shape_cast %10 : vector<16xf32> to vector<16x1xf32>
    %cst_6 = arith.constant 1.280000e+02 : f32
    %12 = vector.broadcast %cst_6 : f32 to vector<16x1xf32>
    %13 = arith.divf %11, %12 : vector<16x1xf32>
    %14 = vector.broadcast %13 : vector<16x1xf32> to vector<16x128xf32>
    %15 = arith.subf %9, %14 : vector<16x128xf32>
    %16 = arith.mulf %15, %15 : vector<16x128xf32>
    %cst_7 = arith.constant dense<0.000000e+00> : vector<16xf32>
    %17 = vector.multi_reduction <add>, %16, %cst_7 [1] : vector<16x128xf32> to vector<16xf32>
    %18 = vector.shape_cast %17 : vector<16xf32> to vector<16x1xf32>
    %cst_8 = arith.constant 1.280000e+02 : f32
    %19 = vector.broadcast %cst_8 : f32 to vector<16x1xf32>
    %20 = arith.divf %18, %19 : vector<16x1xf32>
    %cst_9 = arith.constant 9.99999974E-6 : f32
    %21 = vector.broadcast %cst_9 : f32 to vector<16x1xf32>
    %22 = arith.addf %20, %21 : vector<16x1xf32>
    %23 = math.rsqrt %22 : vector<16x1xf32>
    %24 = vector.broadcast %23 : vector<16x1xf32> to vector<16x128xf32>
    %25 = arith.mulf %15, %24 : vector<16x128xf32>
    %c0_10 = arith.constant 0 : index
    %c0_11 = arith.constant 0 : index
    %26 = vector.load %arg3[%c0_10, %c0_11] : memref<8x128xf32, #tpu.memory_space<vmem>>, vector<8x128xf32>
    %27 = vector.extract_strided_slice %26 {offsets = [0, 0], sizes = [1, 128], strides = [1, 1]} : vector<8x128xf32> to vector<1x128xf32>
    %28 = vector.broadcast %27 : vector<1x128xf32> to vector<16x128xf32>
    %29 = arith.mulf %25, %28 : vector<16x128xf32>
    %30 = vector.extract_strided_slice %26 {offsets = [1, 0], sizes = [1, 128], strides = [1, 1]} : vector<8x128xf32> to vector<1x128xf32>
    %31 = vector.broadcast %30 : vector<1x128xf32> to vector<16x128xf32>
    %32 = arith.addf %29, %31 : vector<16x128xf32>
    %cst_12 = arith.constant dense<0xFF800000> : vector<16xf32>
    %33 = vector.multi_reduction <maximumf>, %32, %cst_12 [1] : vector<16x128xf32> to vector<16xf32>
    %34 = vector.shape_cast %33 : vector<16xf32> to vector<16x1xf32>
    %35 = vector.broadcast %34 : vector<16x1xf32> to vector<16x128xf32>
    %36 = arith.subf %32, %35 : vector<16x128xf32>
    %37 = math.exp %36 : vector<16x128xf32>
    %cst_13 = arith.constant dense<0.000000e+00> : vector<16xf32>
    %38 = vector.multi_reduction <add>, %37, %cst_13 [1] : vector<16x128xf32> to vector<16xf32>
    %39 = vector.shape_cast %38 : vector<16xf32> to vector<16x1xf32>
    %40 = vector.broadcast %39 : vector<16x1xf32> to vector<16x128xf32>
    %41 = arith.divf %37, %40 : vector<16x128xf32>
    %c0_14 = arith.constant 0 : index
    %c0_15 = arith.constant 0 : index
    %42 = vector.load %arg5[%c0_14, %c0_15] : memref<16x128xf32, #tpu.memory_space<vmem>>, vector<16x128xf32>
    tpu.vector_store %arg5[%c0_14, %c0_15], %41 {strides = array<i32>} : memref<16x128xf32, #tpu.memory_space<vmem>>, vector<16x128xf32>,
    return
  }
  func.func @transform_0(%arg0: i32) -> (i32, i32) {
    %c0_i32 = arith.constant 0 : i32
    %c0_i32_0 = arith.constant 0 : i32
    return %arg0, %c0_i32 : i32, i32
  }
  func.func @transform_1(%arg0: i32) -> (i32, i32) {
    %c0_i32 = arith.constant 0 : i32
    %c0_i32_0 = arith.constant 0 : i32
    %c0_i32_1 = arith.constant 0 : i32
    return %c0_i32, %c0_i32_0 : i32, i32
  }
  func.func @transform_2(%arg0: i32) -> (i32, i32) {
    %c0_i32 = arith.constant 0 : i32
    %c0_i32_0 = arith.constant 0 : i32
    %c0_i32_1 = arith.constant 0 : i32
    return %c0_i32, %c0_i32_0 : i32, i32
  }
  func.func @transform_3(%arg0: i32) -> (i32, i32) {
    %c0_i32 = arith.constant 0 : i32
    %c0_i32_0 = arith.constant 0 : i32
    return %arg0, %c0_i32 : i32, i32
  }
  func.func @transform_4(%arg0: i32) -> (i32, i32) {
    %c0_i32 = arith.constant 0 : i32
    %c0_i32_0 = arith.constant 0 : i32
    return %arg0, %c0_i32 : i32, i32
  }
}

</mosaic_0001>

<llo_original>
// kernel: tpu_custom_call.1
$region0: #{tpu_custom_call.1}
  #allocation0 [shape = 'u32[]', space=smem, size = 0x4, offset = 0x4, fixed_abs, tag = 'smem constant byte address 0x4 - core index']
  #allocation1 [shape = 'u32[144,128]{1,0:T(1,128)}', space=vmem, size = 0x12000, scoped, tag = 'internal scratch']
  %s0 = inlined_call_operand.vmem [shape: s32[16,1], index: 0, kind: input, shape index: {}]
  %s1 = inlined_call_operand.hbm [shape: f32[128,128], index: 1, kind: input, shape index: {}]
  %s2 = inlined_call_operand.hbm [shape: f32[8,128], index: 2, kind: input, shape index: {}]
  %s3 = inlined_call_operand.vmem [shape: f32[16,128], index: 3, kind: input, shape index: {}]
  %s4 = inlined_call_operand.hbm [shape: f32[16,128], index: 4, kind: output, shape index: {}]
  %s5 = sld [smem:[#allocation0]]
  $region34: #{tpu_custom_call.1} parent=0
    _
  %s7 = ssub.s32 1, %s5
  %s8 = scalar_select 0, %s7, %s5
  $region1: #{tpu_custom_call.1} parent=0
    #allocation2 [shape = 'u8[65536]{0}', space=vmem, size = 0x10000, scoped, tag = 'input window, operand 1, single buffered']
    #allocation3 [shape = 's32[1]{0}', space=sflag, size = 0x4, scoped, tag = 'scoped memory for tpu_custom_call.1']
    #allocation4 [shape = 's32[1]{0}', space=sflag, size = 0x4, scoped, tag = 'scoped memory for tpu_custom_call.1']
    #allocation5 [shape = 'u8[4096]{0}', space=vmem, size = 0x1000, scoped, tag = 'input window, operand 2, single buffered']
    #allocation6 [shape = 's32[1]{0}', space=sflag, size = 0x4, scoped, tag = 'scoped memory for tpu_custom_call.1']
    #allocation7 [shape = 'u8[8192]{0}', space=vmem, size = 0x2000, scoped, tag = 'output window, operand 0, single buffered']
    %9 = vsyncpa [#allocation3], 0
    %10 = vsyncpa [#allocation6], 0
    %11 = vsyncpa [#allocation4], 0
    // Predicated region
    $region2: #{tpu_custom_call.1} parent=1 // pred_check
      _
    $region3: #{tpu_custom_call.1} parent=1 // pred_check_branch
      %13 = sbr.rel (0) target = $region5
    $region4: #{tpu_custom_call.1} parent=1 // pred_region
      _
    $region5: #{tpu_custom_call.1} parent=1 // pred_fallthru
      _
    // Predicated region
    $region6: #{tpu_custom_call.1} parent=1 // pred_check
      _
    $region7: #{tpu_custom_call.1} parent=1 // pred_check_branch
      %15 = sbr.rel (0) target = $region9
    $region8: #{tpu_custom_call.1} parent=1 // pred_region
      %s17 = ssub.s32 2048, 2048
      %18 = vsyncadd [#allocation3], %s17
      %s19 = sshll.u32 [#allocation2], 4
      %s20 = int_to_ptr.vmem [resolvable:$true] %s19
      %25 = dma.hbm_to_vmem [thread:$0]  %s1, 2048, %s20, [#allocation3], 128, 128, 8
    $region9: #{tpu_custom_call.1} parent=1 // pred_fallthru
      _
    // Predicated region
    $region10: #{tpu_custom_call.1} parent=1 // pred_check
      _
    $region11: #{tpu_custom_call.1} parent=1 // pred_check_branch
      %27 = sbr.rel (0) target = $region13
    $region12: #{tpu_custom_call.1} parent=1 // pred_region
      %s29 = ssub.s32 128, 128
      %30 = vsyncadd [#allocation6], %s29
      %s32 = sshll.u32 [#allocation5], 4
      %s33 = int_to_ptr.vmem [resolvable:$true] %s32
      %35 = dma.hbm_to_vmem [thread:$0]  %s2, 128, %s33, [#allocation6]
    $region13: #{tpu_custom_call.1} parent=1 // pred_fallthru
      _
    // Predicated region
    $region14: #{tpu_custom_call.1} parent=1 // pred_check
      _
    $region15: #{tpu_custom_call.1} parent=1 // pred_check_branch
      %37 = sbr.rel (0) target = $region17
    $region16: #{tpu_custom_call.1} parent=1 // pred_region
      _
    $region17: #{tpu_custom_call.1} parent=1 // pred_fallthru
      _
    // Predicated region
    $region18: #{tpu_custom_call.1} parent=1 // pred_check
      _
    $region19: #{tpu_custom_call.1} parent=1 // pred_check_branch
      %39 = sbr.rel (0) target = $region21
    $region20: #{tpu_custom_call.1} parent=1 // pred_region
      %40 = dma.done [#allocation3], 2048
    $region21: #{tpu_custom_call.1} parent=1 // pred_fallthru
      _
    // Predicated region
    $region22: #{tpu_custom_call.1} parent=1 // pred_check
      _
    $region23: #{tpu_custom_call.1} parent=1 // pred_check_branch
      %42 = sbr.rel (0) target = $region25
    $region24: #{tpu_custom_call.1} parent=1 // pred_region
      %43 = dma.done [#allocation6], 128
    $region25: #{tpu_custom_call.1} parent=1 // pred_fallthru
      _
    %v44 = vld [vmem:[%s0] sm:$0xff]
    %v45 = vld [vmem:[%s0 + $0x8] sm:$0xff]
    %v46 = vlaneseq
    %v47 = vand.u32 %v46, 127
    %48 = vset.pattern.permute.xlu0 0
    %49 = vperm.xlu0 %48, %v44
    %v50 = vpop.permute.xlu0 %49
    %51 = vset.pattern.permute.xlu0 0
    %52 = vperm.xlu0 %51, %v45
    %v53 = vpop.permute.xlu0 %52
    %vm54 = vcmp.eq.s32.totalorder %v47, %v50
    %vm55 = vcmp.eq.s32.totalorder %v47, %v53
    %v56 = vsel %vm54, 1, 0
    %v57 = vsel %vm55, 1, 0
    %v58 = vcvt.s32.f32 %v56
    %v59 = vcvt.s32.f32 %v57
    %v60 = vld [vmem:[#allocation2] sm:$0xff]
    %v61 = vld [vmem:[#allocation2 + $0x8] sm:$0xff]
    %v62 = vld [vmem:[#allocation2 + $0x10] sm:$0xff]
    %v63 = vld [vmem:[#allocation2 + $0x18] sm:$0xff]
    %v64 = vld [vmem:[#allocation2 + $0x20] sm:$0xff]
    %v65 = vld [vmem:[#allocation2 + $0x28] sm:$0xff]
    %v66 = vld [vmem:[#allocation2 + $0x30] sm:$0xff]
    %v67 = vld [vmem:[#allocation2 + $0x38] sm:$0xff]
    %v68 = vld [vmem:[#allocation2 + $0x40] sm:$0xff]
    %v69 = vld [vmem:[#allocation2 + $0x48] sm:$0xff]
    %v70 = vld [vmem:[#allocation2 + $0x50] sm:$0xff]
    %v71 = vld [vmem:[#allocation2 + $0x58] sm:$0xff]
    %v72 = vld [vmem:[#allocation2 + $0x60] sm:$0xff]
    %v73 = vld [vmem:[#allocation2 + $0x68] sm:$0xff]
    %v74 = vld [vmem:[#allocation2 + $0x70] sm:$0xff]
    %v75 = vld [vmem:[#allocation2 + $0x78] sm:$0xff]
    %76 = vmatprep.subr.mxu0 0.0
    %77 = vmatpush1.msra.mxu0 %v75
    %78 = vmatprep.subr.mxu0 0.0
    %79 = vmatpush1.msra.mxu0 %v74
    %80 = vmatprep.subr.mxu0 0.0
    %81 = vmatpush1.msra.mxu0 %v73
    %82 = vmatprep.subr.mxu0 0.0
    %83 = vmatpush1.msra.mxu0 %v72
    %84 = vmatprep.subr.mxu0 0.0
    %85 = vmatpush1.msra.mxu0 %v71
    %86 = vmatprep.subr.mxu0 0.0
    %87 = vmatpush1.msra.mxu0 %v70
    %88 = vmatprep.subr.mxu0 0.0
    %89 = vmatpush1.msra.mxu0 %v69
    %90 = vmatprep.subr.mxu0 0.0
    %91 = vmatpush1.msra.mxu0 %v68
    %92 = vmatprep.subr.mxu0 0.0
    %93 = vmatpush1.msra.mxu0 %v67
    %94 = vmatprep.subr.mxu0 0.0
    %95 = vmatpush1.msra.mxu0 %v66
    %96 = vmatprep.subr.mxu0 0.0
    %97 = vmatpush1.msra.mxu0 %v65
    %98 = vmatprep.subr.mxu0 0.0
    %99 = vmatpush1.msra.mxu0 %v64
    %100 = vmatprep.subr.mxu0 0.0
    %101 = vmatpush1.msra.mxu0 %v63
    %102 = vmatprep.subr.mxu0 0.0
    %103 = vmatpush1.msra.mxu0 %v62
    %104 = vmatprep.subr.mxu0 0.0
    %105 = vmatpush1.msra.mxu0 %v61
    %106 = vmatprep.subr.mxu0 0.0
    %107 = vmatpush1.msra.mxu0 %v60
    %108 = vmatprep.subr.mxu0 0.0
    %109 = vmatpush2.msra.mxu0 0.0
    %110 = vmatprep.subr.mxu0 0.0
    %111 = vmatpush2.msra.mxu0 0.0
    %112 = vmatprep.subr.mxu0 0.0
    %113 = vmatpush2.msra.mxu0 0.0
    %114 = vmatprep.subr.mxu0 0.0
    %115 = vmatpush2.msra.mxu0 0.0
    %116 = vmatprep.subr.mxu0 0.0
    %117 = vmatpush2.msra.mxu0 0.0
    %118 = vmatprep.subr.mxu0 0.0
    %119 = vmatpush2.msra.mxu0 0.0
    %120 = vmatprep.subr.mxu0 0.0
    %121 = vmatpush2.msra.mxu0 0.0
    %122 = vmatprep.subr.mxu0 0.0
    %123 = vmatpush2.msra.mxu0 0.0
    %124 = vmatprep.subr.mxu0 0.0
    %125 = vmatpush2.msra.mxu0 0.0
    %126 = vmatprep.subr.mxu0 0.0
    %127 = vmatpush2.msra.mxu0 0.0
    %128 = vmatprep.subr.mxu0 0.0
    %129 = vmatpush2.msra.mxu0 0.0
    %130 = vmatprep.subr.mxu0 0.0
    %131 = vmatpush2.msra.mxu0 0.0
    %132 = vmatprep.subr.mxu0 0.0
    %133 = vmatpush2.msra.mxu0 0.0
    %134 = vmatprep.subr.mxu0 0.0
    %135 = vmatpush2.msra.mxu0 0.0
    %136 = vmatprep.subr.mxu0 0.0
    %137 = vmatpush2.msra.mxu0 0.0
    %138 = vmatprep.subr.mxu0 0.0
    %139 = vmatpush2.msra.mxu0 0.0
    %140 = vmatprep.mubr.f32.mxu0 0.0
    %141 = vmatmul.mubr.f32.gmra.mxu0 %v58
    %v142 = vpop.f32.mrf.mxu0
    %v143 = vadd.f32 0.0, %v142
    %v144 = vpop.f32.mrf.mxu0
    %145 = vmatprep.mubr.f32.mxu0 0.0
    %146 = vmatmul.mubr.f32.gmra.mxu0 %v59
    %v147 = vpop.f32.mrf.mxu0
    %v148 = vadd.f32 0.0, %v147
    %v149 = vpop.f32.mrf.mxu0
    %150 = vdwg.mxu0
    %v151 = vld [vmem:[%s3] sm:$0xff]
    %v152 = vld [vmem:[%s3 + $0x8] sm:$0xff]
    %v153 = vadd.f32 %v151, %v143
    %v154 = vadd.f32 %v152, %v148
    %155 = vadd.xlane.f32.xlu0 %v153
    %v156 = vpop.xlane.xlu0 %155
    %157 = vadd.xlane.f32.xlu0 %v154
    %v158 = vpop.xlane.xlu0 %157
    %v159 = vrcp.pop 128.0
    %v160 = vmul.f32 %v156, %v159
    %v161 = vmul.f32 %v158, %v159
    %v162 = vsub.f32 %v153, %v160
    %v163 = vsub.f32 %v154, %v161
    %v164 = vmul.f32 %v162, %v162
    %v165 = vmul.f32 %v163, %v163
    %166 = vadd.xlane.f32.xlu0 %v164
    %v167 = vpop.xlane.xlu0 %166
    %168 = vadd.xlane.f32.xlu0 %v165
    %v169 = vpop.xlane.xlu0 %168
    %v170 = vmul.f32 %v167, %v159
    %v171 = vmul.f32 %v169, %v159
    %v172 = vadd.f32 %v170, 1e-05
    %v173 = vadd.f32 %v171, 1e-05
    %v174 = vrsqrt.pop %v172
    %v175 = vrsqrt.pop %v173
    %v176 = vmul.f32 %v162, %v174
    %v177 = vmul.f32 %v163, %v175
    %v178 = vld [vmem:[#allocation5] sm:$0xff]
    %v179 = vlaneseq
    %v180 = vshrl.u32 %v179, 7
    %v181 = vsub.s32 0, %v180
    %v182 = vrot.slane %v178, %v181
    %v183 = vmul.f32 %v176, %v182
    %v184 = vmul.f32 %v177, %v182
    %v185 = vlaneseq
    %v186 = vshrl.u32 %v185, 7
    %v187 = vsub.s32 1, %v186
    %v188 = vrot.slane %v178, %v187
    %v189 = vadd.f32 %v183, %v188
    %v190 = vadd.f32 %v184, %v188
    %191 = vmax.xlane.f32.xlu0 %v189
    %v192 = vpop.xlane.xlu0 %191
    %193 = vmax.xlane.f32.xlu0 %v190
    %v194 = vpop.xlane.xlu0 %193
    %v195 = vsub.f32 %v189, %v192
    %v196 = vsub.f32 %v190, %v194
    %v197 = vmul.f32 %v195, 1.442695
    %v198 = vpow.pop %v197
    %v199 = vmul.f32 %v196, 1.442695
    %v200 = vpow.pop %v199
    %201 = vadd.xlane.f32.xlu0 %v198
    %v202 = vpop.xlane.xlu0 %201
    %203 = vadd.xlane.f32.xlu0 %v200
    %v204 = vpop.xlane.xlu0 %203
    %v205 = vrcp.pop %v202
    %v206 = vmul.f32 %v198, %v205
    %v207 = vrcp.pop %v204
    %v208 = vmul.f32 %v200, %v207
    %209 = vst [vmem:[#allocation7] sm:$0xff] %v206
    %210 = vst [vmem:[#allocation7 + $0x8] sm:$0xff] %v208
    // Predicated region
    $region26: #{tpu_custom_call.1} parent=1 // pred_check
      _
    $region27: #{tpu_custom_call.1} parent=1 // pred_check_branch
      %212 = sbr.rel (0) target = $region29
    $region28: #{tpu_custom_call.1} parent=1 // pred_region
      %s214 = ssub.s32 256, 256
      %215 = vsyncadd [#allocation4], %s214
      %s216 = sshll.u32 [#allocation7], 4
      %s217 = int_to_ptr.vmem [resolvable:$true] %s216
      %222 = dma.vmem_to_hbm [thread:$0]  %s217, 256, %s4, [#allocation4], 128, 128, 8
    $region29: #{tpu_custom_call.1} parent=1 // pred_fallthru
      _
    // Predicated region
    $region30: #{tpu_custom_call.1} parent=1 // pred_check
      _
    $region31: #{tpu_custom_call.1} parent=1 // pred_check_branch
      %224 = sbr.rel (0) target = $region33
    $region32: #{tpu_custom_call.1} parent=1 // pred_region
      %225 = dma.done [#allocation4], 256
    $region33: #{tpu_custom_call.1} parent=1 // pred_fallthru
      _
    %226 = vsyncpa [#allocation3], 1
    %227 = vsyncpa [#allocation6], 1
    %228 = vsyncpa [#allocation4], 1

</llo_original>
